<compile_context>
chip_gen: v6e
topology: v6e:2x2x1
jax: 0.10.0
libtpu: 0.0.40
codegen_flags: <defaults>
</compile_context>

<pallas_src>
import math

import jax
import jax.numpy as jnp
from jax.experimental import pallas as pl
from jax.experimental.pallas import tpu as pltpu


def make_positional_table(d_model: int, max_len: int = 5000,
                          dtype=jnp.float32) -> jnp.ndarray:
    """Deterministic pe buffer, shape [1, max_len, d_model] (as in __init__)."""
    position = jnp.arange(max_len, dtype=jnp.float32)[:, None]          # [L, 1]
    div_term = jnp.exp(
        jnp.arange(0, d_model, 2, dtype=jnp.float32)
        * (-math.log(10000.0) / d_model))                               # [D/2]
    angles = position * div_term                                        # [L, D/2]
    pe = jnp.zeros((max_len, d_model), dtype=jnp.float32)
    pe = pe.at[:, 0::2].set(jnp.sin(angles))
    pe = pe.at[:, 1::2].set(jnp.cos(angles)[:, : d_model // 2])
    return pe[None].astype(dtype)                                       # [1, L, D]


def _pe_add_kernel(x_ref, pe_ref, o_ref):
    # x_ref: (TS, TL) lane-dense tile; pe_ref: (1, TL) VMEM-resident slab.
    # Broadcasting handles the leading-singleton broadcast over the TS rows.
    o_ref[...] = x_ref[...] + pe_ref[...]


def _budgets():
    """(per-tile byte budget, vmem_limit_bytes) keyed off the TPU generation."""
    vmem_bytes = None
    try:
        info = pltpu.get_tpu_info()
        vmem_bytes = getattr(info, "vmem_capacity_bytes", None)
    except Exception:
        vmem_bytes = None
    if vmem_bytes is None:
        vmem_bytes = 64 * 1024 * 1024                 # conservative (v7x floor)
    if vmem_bytes >= 96 * 1024 * 1024:                # v5e / v6e: 128 MiB VMEM
        return 14 * 1024 * 1024, 96 * 1024 * 1024
    # v7x: 64 MiB VMEM per TensorCore -> smaller tiles, modest scoped limit.
    return 7 * 1024 * 1024, 44 * 1024 * 1024


def _sublane_multiple(itemsize: int) -> int:
    # f32 -> 8, bf16 -> 16, int8/fp8 -> 32 (sub-32-bit dtypes pack along sublanes).
    return {1: 32, 2: 16, 4: 8}.get(itemsize, 8)


def _pick_lane_fold(S: int, BD: int, itemsize: int, tile_bytes: int,
                    target_lanes: int = 8192) -> int:
    """Fold k sequence rows into the lane axis so the trailing dim is a large
    multiple of 128 (unmasked full-lane stores).  k must divide S and the
    folded row must fit inside one tile-byte budget."""
    k_cap = min(S, max(1, tile_bytes // max(1, BD * itemsize)), 65536)
    best = 0
    for k in range(1, k_cap + 1):
        if S % k:
            continue
        width = k * BD
        if width * itemsize > tile_bytes:
            break
        if width % 128:
            continue
        best = k
        if width >= target_lanes:
            break
    return best if best else 1            # fallback: no aligned fold possible


def _pick_tile_dims(rows: int, width: int, itemsize: int,
                    tile_bytes: int, sublane: int):
    """Pick (TS rows, TL lanes) per grid step, honoring the byte budget and the
    (8,128)/full-extent block constraints."""
    row_bytes = width * itemsize
    if row_bytes * min(rows, sublane) <= tile_bytes:
        # Full row width fits: single lane block, as many rows as the budget allows.
        tl = width
        ts = min(rows, max(1, tile_bytes // row_bytes))
        if ts < rows:
            ts = max(sublane, (ts // sublane) * sublane)   # round DOWN -> budget held
        return ts, tl
    # Even one sublane-group of full-width rows blows the budget -> block lanes.
    ts = rows if rows < sublane else sublane
    tl = max(128, (tile_bytes // (ts * itemsize) // 128) * 128)
    tl = min(tl, width)
    return ts, tl


def positional_encoding_forward(x: jnp.ndarray, pe: jnp.ndarray,
                                *, donate_x: bool = False) -> jnp.ndarray:
    """x: [S, B, D]; pe: [1, max_len, D].  Returns x + pe[:, :B, :] (broadcast over S)."""
    S, B, D = x.shape
    max_len = pe.shape[1]
    if B > max_len:
        raise ValueError(f"batch_size ({B}) exceeds the positional table's "
                         f"max_len ({max_len}); pe[:, :B] would be short.")

    BD = B * D
    itemsize = jnp.dtype(x.dtype).itemsize
    sublane = _sublane_multiple(itemsize)
    tile_bytes, vmem_limit = _budgets()

    # --- lane-dense layout plumbing (free wrapper reshapes) -------------------
    pe_flat = pe[0, :B, :].astype(x.dtype).reshape(1, BD)      # [1, B*D]
    k = _pick_lane_fold(S, BD, itemsize, tile_bytes)
    rows, width = S // k, k * BD
    x2 = x.reshape(rows, width)
    pe2 = jnp.tile(pe_flat, (1, k)) if k > 1 else pe_flat      # [1, width]

    # --- tile sizing ----------------------------------------------------------
    ts, tl = _pick_tile_dims(rows, width, itemsize, tile_bytes, sublane)
    n_row = pl.cdiv(rows, ts)
    n_lane = pl.cdiv(width, tl)
    # Give megacore (v7x: 2 TensorCores) at least two parallel steps when the
    # problem is big enough that splitting keeps tiles large.
    if n_row * n_lane < 2 and rows >= 2 * sublane:
        ts = max(sublane, (pl.cdiv(rows, 2) // sublane) * sublane)
        n_row = pl.cdiv(rows, ts)

    out2 = pl.pallas_call(
        _pe_add_kernel,
        out_shape=jax.ShapeDtypeStruct((rows, width), x.dtype),
        grid_spec=pl.GridSpec(
            # Lane blocks outer, row blocks inner -> pe lane slab stays resident
            # across the (fast) row loop.
            grid=(n_lane, n_row),
            in_specs=[
                pl.BlockSpec((ts, tl), lambda j, i: (i, j)),   # x: streamed tiles
                pl.BlockSpec((1, tl), lambda j, i: (0, j)),    # pe: resident slab
            ],
            out_specs=pl.BlockSpec((ts, tl), lambda j, i: (i, j)),
        ),
        compiler_params=pltpu.CompilerParams(
            dimension_semantics=("parallel", "parallel"),
            vmem_limit_bytes=vmem_limit,
        ),
        input_output_aliases={0: 0} if donate_x else {},
    )(x2, pe2)

    return out2.reshape(S, B, D)


if __name__ == "__main__":
    # Small shapes consistent with forward(): [seq_len, batch, d_model]
    seq_len, batch, d_model = 8, 2, 32
    max_len = 64

    key = jax.random.PRNGKey(0)
    x = jax.random.normal(key, (seq_len, batch, d_model), dtype=jnp.float32)

    pe = make_positional_table(d_model, max_len=max_len, dtype=jnp.float32)

    out = positional_encoding_forward(x, pe)
    out = jax.block_until_ready(out)

    # Reference (plain JAX) check of the exact PyTorch semantics.
    ref = x + pe[:, :x.shape[1]]
    assert out.shape == x.shape and out.dtype == x.dtype
    assert jnp.allclose(out, ref, atol=1e-6, rtol=1e-6)

    print("KERNEL_OK")
</pallas_src>

<mosaic_0001>
module attributes {stable_mosaic.version = 11 : i64} {
  func.func @_pe_add_kernel(%arg0: i32, %arg1: i32, %arg2: memref<1x512xf32, #tpu.memory_space<vmem>>, %arg3: memref<1x512xf32, #tpu.memory_space<vmem>>, %arg4: memref<1x512xf32, #tpu.memory_space<vmem>>) attributes {dimension_semantics = [#tpu.dimension_semantics<parallel>, #tpu.dimension_semantics<parallel>], iteration_bounds = array<i64: 1, 1>, scalar_prefetch = 0 : i64, scratch_operands = 0 : i64, tpu.core_type = #tpu.core_type<tc>, window_params = [{transform_indices = @transform_0, window_bounds = array<i64: 1, 512>}, {transform_indices = @transform_1, window_bounds = array<i64: 1, 512>}, {transform_indices = @transform_2, window_bounds = array<i64: 1, 512>}]} {
    %c0 = arith.constant 0 : index
    %c0_0 = arith.constant 0 : index
    %0 = vector.load %arg2[%c0, %c0_0] : memref<1x512xf32, #tpu.memory_space<vmem>>, vector<1x512xf32>
    %c0_1 = arith.constant 0 : index
    %c0_2 = arith.constant 0 : index
    %1 = vector.load %arg3[%c0_1, %c0_2] : memref<1x512xf32, #tpu.memory_space<vmem>>, vector<1x512xf32>
    %2 = arith.addf %0, %1 : vector<1x512xf32>
    %c0_3 = arith.constant 0 : index
    %c0_4 = arith.constant 0 : index
    %3 = vector.load %arg4[%c0_3, %c0_4] : memref<1x512xf32, #tpu.memory_space<vmem>>, vector<1x512xf32>
    tpu.vector_store %arg4[%c0_3, %c0_4], %2 {strides = array<i32>} : memref<1x512xf32, #tpu.memory_space<vmem>>, vector<1x512xf32>,
    return
  }
  func.func @transform_0(%arg0: i32, %arg1: i32) -> (i32, i32) {
    %c0_i32 = arith.constant 0 : i32
    return %arg1, %arg0 : i32, i32
  }
  func.func @transform_1(%arg0: i32, %arg1: i32) -> (i32, i32) {
    %c0_i32 = arith.constant 0 : i32
    %c0_i32_0 = arith.constant 0 : i32
    return %c0_i32, %arg0 : i32, i32
  }
  func.func @transform_2(%arg0: i32, %arg1: i32) -> (i32, i32) {
    %c0_i32 = arith.constant 0 : i32
    return %arg1, %arg0 : i32, i32
  }
}

</mosaic_0001>

<llo_original>
// kernel: tpu_custom_call.1
$region0: #{tpu_custom_call.1}
  #allocation0 [shape = 'u32[]', space=smem, size = 0x4, offset = 0x4, fixed_abs, tag = 'smem constant byte address 0x4 - core index']
  #allocation1 [shape = 'u32[144,128]{1,0:T(1,128)}', space=vmem, size = 0x12000, scoped, tag = 'internal scratch']
  %s0 = inlined_call_operand.hbm [shape: f32[1,512], index: 0, kind: input, shape index: {}]
  %s1 = inlined_call_operand.hbm [shape: f32[1,512], index: 1, kind: input, shape index: {}]
  %s2 = inlined_call_operand.hbm [shape: f32[1,512], index: 2, kind: output, shape index: {}]
  %s3 = sld [smem:[#allocation0]]
  $region26: #{tpu_custom_call.1} parent=0
    _
  %s5 = ssub.s32 1, %s3
  %s6 = scalar_select 0, %s5, %s3
  $region1: #{tpu_custom_call.1} parent=0
    #allocation2 [shape = 'u8[2048]{0}', space=vmem, size = 0x800, scoped, tag = 'input window, operand 0, single buffered']
    #allocation3 [shape = 's32[1]{0}', space=sflag, size = 0x4, scoped, tag = 'scoped memory for tpu_custom_call.1']
    #allocation4 [shape = 's32[1]{0}', space=sflag, size = 0x4, scoped, tag = 'scoped memory for tpu_custom_call.1']
    #allocation5 [shape = 'u8[2048]{0}', space=vmem, size = 0x800, scoped, tag = 'input window, operand 1, single buffered']
    #allocation6 [shape = 's32[1]{0}', space=sflag, size = 0x4, scoped, tag = 'scoped memory for tpu_custom_call.1']
    #allocation7 [shape = 'u8[2048]{0}', space=vmem, size = 0x800, scoped, tag = 'output window, operand 0, single buffered']
    %7 = vsyncpa [#allocation3], 0
    %8 = vsyncpa [#allocation6], 0
    %9 = vsyncpa [#allocation4], 0
    // Predicated region
    $region2: #{tpu_custom_call.1} parent=1 // pred_check
      _
    $region3: #{tpu_custom_call.1} parent=1 // pred_check_branch
      %11 = sbr.rel (0) target = $region5
    $region4: #{tpu_custom_call.1} parent=1 // pred_region
      %s13 = ssub.s32 64, 64
      %14 = vsyncadd [#allocation3], %s13
      %s16 = sshll.u32 [#allocation2], 4
      %s17 = int_to_ptr.vmem [resolvable:$true] %s16
      %19 = dma.hbm_to_vmem [thread:$0]  %s0, 64, %s17, [#allocation3]
    $region5: #{tpu_custom_call.1} parent=1 // pred_fallthru
      _
    // Predicated region
    $region6: #{tpu_custom_call.1} parent=1 // pred_check
      _
    $region7: #{tpu_custom_call.1} parent=1 // pred_check_branch
      %21 = sbr.rel (0) target = $region9
    $region8: #{tpu_custom_call.1} parent=1 // pred_region
      %s23 = ssub.s32 64, 64
      %24 = vsyncadd [#allocation6], %s23
      %s26 = sshll.u32 [#allocation5], 4
      %s27 = int_to_ptr.vmem [resolvable:$true] %s26
      %29 = dma.hbm_to_vmem [thread:$0]  %s1, 64, %s27, [#allocation6]
    $region9: #{tpu_custom_call.1} parent=1 // pred_fallthru
      _
    // Predicated region
    $region10: #{tpu_custom_call.1} parent=1 // pred_check
      _
    $region11: #{tpu_custom_call.1} parent=1 // pred_check_branch
      %31 = sbr.rel (0) target = $region13
    $region12: #{tpu_custom_call.1} parent=1 // pred_region
      %32 = dma.done [#allocation3], 64
    $region13: #{tpu_custom_call.1} parent=1 // pred_fallthru
      _
    // Predicated region
    $region14: #{tpu_custom_call.1} parent=1 // pred_check
      _
    $region15: #{tpu_custom_call.1} parent=1 // pred_check_branch
      %34 = sbr.rel (0) target = $region17
    $region16: #{tpu_custom_call.1} parent=1 // pred_region
      %35 = dma.done [#allocation6], 64
    $region17: #{tpu_custom_call.1} parent=1 // pred_fallthru
      _
    %v36 = vld [vmem:[#allocation2] sm:$0xf]
    %v37 = vld [vmem:[#allocation5] sm:$0xf]
    %v38 = vadd.f32 %v36, %v37
    %v39 = vlaneseq
    %vm40 = vcmp.ge.s32.totalorder %v39, 0
    %vm41 = vcmp.lt.s32.totalorder %v39, 512
    %vm42 = vmand %vm40, %vm41
    %43 = vst.msk [vmem:[#allocation7] sm:$0xf] %vm42, %v38
    // Predicated region
    $region18: #{tpu_custom_call.1} parent=1 // pred_check
      _
    $region19: #{tpu_custom_call.1} parent=1 // pred_check_branch
      %45 = sbr.rel (0) target = $region21
    $region20: #{tpu_custom_call.1} parent=1 // pred_region
      %s47 = ssub.s32 64, 64
      %48 = vsyncadd [#allocation4], %s47
      %s50 = sshll.u32 [#allocation7], 4
      %s51 = int_to_ptr.vmem [resolvable:$true] %s50
      %53 = dma.vmem_to_hbm [thread:$0]  %s51, 64, %s2, [#allocation4]
    $region21: #{tpu_custom_call.1} parent=1 // pred_fallthru
      _
    // Predicated region
    $region22: #{tpu_custom_call.1} parent=1 // pred_check
      _
    $region23: #{tpu_custom_call.1} parent=1 // pred_check_branch
      %55 = sbr.rel (0) target = $region25
    $region24: #{tpu_custom_call.1} parent=1 // pred_region
      %56 = dma.done [#allocation4], 64
    $region25: #{tpu_custom_call.1} parent=1 // pred_fallthru
      _
    %57 = vsyncpa [#allocation3], 1
    %58 = vsyncpa [#allocation6], 1
    %59 = vsyncpa [#allocation4], 1

</llo_original>
